<compile_context>
chip_gen: v6e
topology: v6e:2x2x1
jax: 0.10.0
libtpu: 0.0.40
codegen_flags: <defaults>
</compile_context>

<pallas_src>
import functools

import jax
import jax.numpy as jnp
from jax.experimental import pallas as pl
from jax.experimental.pallas import tpu as pltpu


def _xcoder_kernel(x_ref, w12_ref, bias_ref, w2b_ref, o_ref,
                   xpad_ref, c1pad_ref, *, ph):
    """Fused conv1+ELU, conv2(cat)+ELU, channel concat. One image per grid step.

    x_ref    : (1, H, W*Cin)           lane-dense input slab
    w12_ref  : (kh, W*Cin, W*Cout)     banded weights, cols = [conv1 | conv2 x-part]
    bias_ref : (1, W*Cout)             [tile(b1, W) | tile(b2, W)], f32
    w2b_ref  : (kh, W*half, W*half)    banded weights for conv2's conv1_out part
    o_ref    : (1, H, W*Cout)          output slab, cols = [conv1 slab | conv2 slab]
    xpad_ref : (Hp, W*Cin)   VMEM scratch, row-halo padded x slab
    c1pad_ref: (Hp, W*half)  VMEM scratch, row-halo padded conv1_out slab
    """
    H = x_ref.shape[1]
    kh = w12_ref.shape[0]
    Hp, WC = xpad_ref.shape
    Wh = c1pad_ref.shape[1]
    p_hi = Hp - ph - H                      # high-side row halo (= kh - 1 - ph)

    def elu(a):                             # alpha=1 ELU in f32; exp arg clamped
        return jnp.where(a > 0, a, jnp.exp(jnp.minimum(a, 0.0)) - 1.0)

    # ---- row-halo zero only; interior written exactly once (no double store) ----
    if ph:
        xpad_ref[:ph, :] = jnp.zeros((ph, WC), xpad_ref.dtype)
        c1pad_ref[:ph, :] = jnp.zeros((ph, Wh), c1pad_ref.dtype)
    if p_hi:
        xpad_ref[ph + H:, :] = jnp.zeros((p_hi, WC), xpad_ref.dtype)
        c1pad_ref[ph + H:, :] = jnp.zeros((p_hi, Wh), c1pad_ref.dtype)
    xpad_ref[ph:ph + H, :] = x_ref[0].astype(xpad_ref.dtype)

    # ---- conv1 and conv2's x-contribution share their LHS: one fused MXU pass
    #      per kernel row, f32 accumulation, biases pre-folded into the acc. ----
    acc12 = jnp.broadcast_to(bias_ref[...], (H, 2 * Wh)).astype(jnp.float32)
    for i in range(kh):                     # static unroll over kernel rows
        acc12 = acc12 + jnp.dot(xpad_ref[i:i + H, :], w12_ref[i],
                                preferred_element_type=jnp.float32)

    c1 = elu(acc12[:, :Wh])                 # conv1_out slab (H, W*half), f32
    acc2 = acc12[:, Wh:]                    # conv2 x-part (+ b2), f32

    # ---- conv2's conv1_out contribution: only a row-halo pad of the slab,
    #      no reshape / re-im2col on the serial conv1 -> conv2 path. ----
    c1pad_ref[ph:ph + H, :] = c1.astype(c1pad_ref.dtype)
    for i in range(kh):
        acc2 = acc2 + jnp.dot(c1pad_ref[i:i + H, :], w2b_ref[i],
                              preferred_element_type=jnp.float32)
    c2 = elu(acc2)

    # ---- cat([conv1_out, conv2_out], C) as one lane-dense (W*Cout) store ----
    o_ref[0] = jnp.concatenate([c1, c2], axis=-1).astype(o_ref.dtype)


def _band(w_hwio, W, pw):
    """(kh, kw, Cin, N) HWIO conv weights -> (kh, W*Cin, W*N) banded matrices.

    The kw column taps and the column 'same' zero padding are folded in, so the
    kernel only needs kh row-shifted matmuls on a lane-dense (rows, W*Cin) slab:
        out[y, x*N + n] = sum_i dot(rows[y + i, :], band[i])[x*N + n]
    """
    kh, kw, Cin, N = w_hwio.shape
    band = jnp.zeros((kh, W * Cin, W * N), w_hwio.dtype)
    for x in range(W):                      # output column
        for j in range(kw):                 # kernel column tap
            xin = x + j - pw                # input column (unpadded coords)
            if 0 <= xin < W:
                band = band.at[:, xin * Cin:(xin + 1) * Cin,
                               x * N:(x + 1) * N].set(w_hwio[:, j])
    return band


def xcoder_forward_impl(x_nchw, params, matmul_dtype=jnp.float32):
    """Xcoder.forward (pre_output=None). NCHW in / NCHW out like PyTorch."""
    B, Cin, H, W = x_nchw.shape
    w1, b1 = params["w1"], params["b1"]
    w2, b2 = params["w2"], params["b2"]
    kh, kw, _, half = w1.shape
    Cout = 2 * half
    ph, pw = (kh - 1) // 2, (kw - 1) // 2   # symmetric 'same' padding (odd k)
    Hp = H + kh - 1

    # NCHW -> lane-dense NHWC slab (single HBM pass).
    # TODO(synk): keep NHWC end-to-end across the network to drop this on v5e.
    x_slab = jnp.transpose(x_nchw, (0, 2, 3, 1)).reshape(B, H, W * Cin)

    # Fuse conv1 with conv2's x-part along the output-channel (N) axis so the
    # shared LHS streams through the MXU once; pre-fuse both biases per column.
    w2a, w2b = w2[:, :, :Cin, :], w2[:, :, Cin:, :]
    band12 = jnp.concatenate([_band(w1, W, pw), _band(w2a, W, pw)], axis=-1)
    band2b = _band(w2b, W, pw)
    bias = jnp.concatenate([jnp.tile(b1, W), jnp.tile(b2, W)])
    bias = bias.reshape(1, W * Cout).astype(jnp.float32)

    # bf16 MXU operands for production channel counts; f32 here keeps the
    # correctness check tight (accumulation / ELU stay f32 either way).
    x_slab = x_slab.astype(matmul_dtype)
    band12 = band12.astype(matmul_dtype)
    band2b = band2b.astype(matmul_dtype)

    kernel = functools.partial(_xcoder_kernel, ph=ph)

    flops = 2 * B * H * W * kh * kw * half * (2 * Cin + half)
    cost = pl.CostEstimate(
        flops=flops,
        transcendentals=B * H * W * Cout,
        bytes_accessed=((x_slab.size + band12.size + band2b.size)
                        * x_slab.dtype.itemsize + B * H * W * Cout * 4))

    out_slab = pl.pallas_call(
        kernel,
        out_shape=jax.ShapeDtypeStruct((B, H, W * Cout), x_nchw.dtype),
        grid_spec=pltpu.PrefetchScalarGridSpec(
            num_scalar_prefetch=0,
            grid=(B,),   # TODO(synk): row-strip (halo) tiling for production H*W
            in_specs=[   # weight/bias blocks are constant -> stay resident in VMEM
                pl.BlockSpec((1, H, W * Cin), lambda b: (b, 0, 0)),
                pl.BlockSpec((kh, W * Cin, W * Cout), lambda b: (0, 0, 0)),
                pl.BlockSpec((1, W * Cout), lambda b: (0, 0)),
                pl.BlockSpec((kh, W * half, W * half), lambda b: (0, 0, 0)),
            ],
            out_specs=pl.BlockSpec((1, H, W * Cout), lambda b: (b, 0, 0)),
            scratch_shapes=[
                pltpu.VMEM((Hp, W * Cin), matmul_dtype),
                pltpu.VMEM((Hp, W * half), matmul_dtype),
            ],
        ),
        compiler_params=pltpu.CompilerParams(
            dimension_semantics=("parallel",),
            vmem_limit_bytes=32 * 1024 * 1024),
        cost_estimate=cost,
    )(x_slab, band12, bias, band2b)

    # [conv1 slab | conv2 slab] -> NCHW cat([conv1_out, conv2_out], C).
    out = out_slab.reshape(B, H, 2, W, half)
    out = jnp.transpose(out, (0, 2, 4, 1, 3)).reshape(B, Cout, H, W)
    return out


xcoder_forward = jax.jit(xcoder_forward_impl, static_argnames=("matmul_dtype",))


def init_xcoder_params(key, previous_in_channels, out_channels, kernel_size):
    """Deterministic synthetic parameters (HWIO weights, matching Xcoder.__init__)."""
    assert out_channels % 2 == 0
    in_ch = sum(previous_in_channels)
    half = out_channels // 2
    k = kernel_size
    k1, k2, k3, k4 = jax.random.split(key, 4)
    s1 = 1.0 / jnp.sqrt(in_ch * k * k)
    s2 = 1.0 / jnp.sqrt((in_ch + half) * k * k)
    return {
        "w1": jax.random.normal(k1, (k, k, in_ch, half), jnp.float32) * s1,
        "b1": jax.random.normal(k2, (half,), jnp.float32) * s1,
        "w2": jax.random.normal(k3, (k, k, in_ch + half, half), jnp.float32) * s2,
        "b2": jax.random.normal(k4, (half,), jnp.float32) * s2,
    }


# ---------------- pure-JAX reference for the correctness check ----------------
def _ref_conv_elu(x_nhwc, w_hwio, b):
    y = jax.lax.conv_general_dilated(
        x_nhwc, w_hwio, window_strides=(1, 1), padding="SAME",
        dimension_numbers=("NHWC", "HWIO", "NHWC"),
        precision=jax.lax.Precision.HIGHEST)
    y = y + b
    return jnp.where(y > 0, y, jnp.exp(jnp.minimum(y, 0.0)) - 1.0)


def _ref_forward(x_nchw, params):
    x = jnp.transpose(x_nchw, (0, 2, 3, 1))
    c1 = _ref_conv_elu(x, params["w1"], params["b1"])
    c2 = _ref_conv_elu(jnp.concatenate([x, c1], axis=-1), params["w2"], params["b2"])
    out = jnp.concatenate([c1, c2], axis=-1)
    return jnp.transpose(out, (0, 3, 1, 2))


if __name__ == "__main__":
    # Xcoder(previous_in_channels=[4], out_channels=8, kernel_size=3),
    # input (B=2, C=4, H=16, W=16).
    key = jax.random.PRNGKey(0)
    kx, kp = jax.random.split(key)

    B, C, H, W = 2, 4, 16, 16
    x = jax.random.normal(kx, (B, C, H, W), jnp.float32)
    params = init_xcoder_params(kp, previous_in_channels=[C],
                                out_channels=8, kernel_size=3)

    out = xcoder_forward(x, params)
    out = jax.block_until_ready(out)

    ref = _ref_forward(x, params)
    assert out.shape == (B, 8, H, W), out.shape
    err = float(jnp.max(jnp.abs(out - ref)))
    assert jnp.allclose(out, ref, atol=1e-3, rtol=1e-3), err

    print("KERNEL_OK")
</pallas_src>

<mosaic_0001>
module attributes {stable_mosaic.version = 11 : i64} {
  func.func @_xcoder_kernel(%arg0: i32, %arg1: memref<1x16x64xf32, #tpu.memory_space<vmem>>, %arg2: memref<3x64x128xf32, #tpu.memory_space<vmem>>, %arg3: memref<1x128xf32, #tpu.memory_space<vmem>>, %arg4: memref<3x64x64xf32, #tpu.memory_space<vmem>>, %arg5: memref<1x16x128xf32, #tpu.memory_space<vmem>>, %arg6: memref<18x64xf32, #tpu.memory_space<vmem>>, %arg7: memref<18x64xf32, #tpu.memory_space<vmem>>) attributes {dimension_semantics = [#tpu.dimension_semantics<parallel>], iteration_bounds = array<i64: 2>, scalar_prefetch = 0 : i64, scratch_operands = 2 : i64, tpu.core_type = #tpu.core_type<tc>, window_params = [{transform_indices = @transform_0, window_bounds = array<i64: 1, 16, 64>}, {pipeline_mode = #tpu.pipeline_mode<synchronous>, transform_indices = @transform_1, window_bounds = array<i64: 3, 64, 128>}, {pipeline_mode = #tpu.pipeline_mode<synchronous>, transform_indices = @transform_2, window_bounds = array<i64: 1, 128>}, {pipeline_mode = #tpu.pipeline_mode<synchronous>, transform_indices = @transform_3, window_bounds = array<i64: 3, 64, 64>}, {transform_indices = @transform_4, window_bounds = array<i64: 1, 16, 128>}]} {
    %cst = arith.constant 0.000000e+00 : f32
    %0 = vector.broadcast %cst : f32 to vector<1x64xf32>
    %c0 = arith.constant 0 : index
    %c0_0 = arith.constant 0 : index
    %1 = vector.load %arg6[%c0, %c0_0] : memref<18x64xf32, #tpu.memory_space<vmem>>, vector<1x64xf32>
    tpu.vector_store %arg6[%c0, %c0_0], %0 {strides = array<i32>} : memref<18x64xf32, #tpu.memory_space<vmem>>, vector<1x64xf32>,
    %cst_1 = arith.constant 0.000000e+00 : f32
    %2 = vector.broadcast %cst_1 : f32 to vector<1x64xf32>
    %c0_2 = arith.constant 0 : index
    %c0_3 = arith.constant 0 : index
    %3 = vector.load %arg7[%c0_2, %c0_3] : memref<18x64xf32, #tpu.memory_space<vmem>>, vector<1x64xf32>
    tpu.vector_store %arg7[%c0_2, %c0_3], %2 {strides = array<i32>} : memref<18x64xf32, #tpu.memory_space<vmem>>, vector<1x64xf32>,
    %cst_4 = arith.constant 0.000000e+00 : f32
    %4 = vector.broadcast %cst_4 : f32 to vector<1x64xf32>
    %c17 = arith.constant 17 : index
    %c0_5 = arith.constant 0 : index
    %5 = vector.load %arg6[%c17, %c0_5] : memref<18x64xf32, #tpu.memory_space<vmem>>, vector<1x64xf32>
    tpu.vector_store %arg6[%c17, %c0_5], %4 {strides = array<i32>} : memref<18x64xf32, #tpu.memory_space<vmem>>, vector<1x64xf32>,
    %cst_6 = arith.constant 0.000000e+00 : f32
    %6 = vector.broadcast %cst_6 : f32 to vector<1x64xf32>
    %c17_7 = arith.constant 17 : index
    %c0_8 = arith.constant 0 : index
    %7 = vector.load %arg7[%c17_7, %c0_8] : memref<18x64xf32, #tpu.memory_space<vmem>>, vector<1x64xf32>
    tpu.vector_store %arg7[%c17_7, %c0_8], %6 {strides = array<i32>} : memref<18x64xf32, #tpu.memory_space<vmem>>, vector<1x64xf32>,
    %c0_9 = arith.constant 0 : index
    %c0_10 = arith.constant 0 : index
    %c0_11 = arith.constant 0 : index
    %8 = vector.load %arg1[%c0_9, %c0_10, %c0_11] : memref<1x16x64xf32, #tpu.memory_space<vmem>>, vector<1x16x64xf32>
    %9 = vector.shape_cast %8 : vector<1x16x64xf32> to vector<16x64xf32>
    %c1 = arith.constant 1 : index
    %c0_12 = arith.constant 0 : index
    %10 = vector.load %arg6[%c1, %c0_12] : memref<18x64xf32, #tpu.memory_space<vmem>>, vector<16x64xf32>
    tpu.vector_store %arg6[%c1, %c0_12], %9 {strides = array<i32>} : memref<18x64xf32, #tpu.memory_space<vmem>>, vector<16x64xf32>,
    %c0_13 = arith.constant 0 : index
    %c0_14 = arith.constant 0 : index
    %11 = vector.load %arg3[%c0_13, %c0_14] : memref<1x128xf32, #tpu.memory_space<vmem>>, vector<1x128xf32>
    %12 = vector.shape_cast %11 : vector<1x128xf32> to vector<1x128xf32>
    %13 = vector.broadcast %12 : vector<1x128xf32> to vector<16x128xf32>
    %c0_15 = arith.constant 0 : index
    %c0_16 = arith.constant 0 : index
    %14 = vector.load %arg6[%c0_15, %c0_16] : memref<18x64xf32, #tpu.memory_space<vmem>>, vector<16x64xf32>
    %c0_17 = arith.constant 0 : index
    %c0_18 = arith.constant 0 : index
    %c0_19 = arith.constant 0 : index
    %15 = vector.load %arg2[%c0_17, %c0_18, %c0_19] : memref<3x64x128xf32, #tpu.memory_space<vmem>>, vector<1x64x128xf32>
    %16 = vector.shape_cast %15 : vector<1x64x128xf32> to vector<64x128xf32>
    %cst_20 = arith.constant dense<0.000000e+00> : vector<16x128xf32>
    %17 = tpu.matmul %14, %16, %cst_20 {dimension_numbers = #tpu.dot_dimension_numbers<[1], [0], [0], [1], [0, 0, 1, 1], [], []>} : vector<16x64xf32>, vector<64x128xf32>, vector<16x128xf32> -> vector<16x128xf32>
    %18 = arith.addf %13, %17 : vector<16x128xf32>
    %c1_21 = arith.constant 1 : index
    %c0_22 = arith.constant 0 : index
    %19 = vector.load %arg6[%c1_21, %c0_22] : memref<18x64xf32, #tpu.memory_space<vmem>>, vector<16x64xf32>
    %c1_23 = arith.constant 1 : index
    %c0_24 = arith.constant 0 : index
    %c0_25 = arith.constant 0 : index
    %20 = vector.load %arg2[%c1_23, %c0_24, %c0_25] : memref<3x64x128xf32, #tpu.memory_space<vmem>>, vector<1x64x128xf32>
    %21 = vector.shape_cast %20 : vector<1x64x128xf32> to vector<64x128xf32>
    %cst_26 = arith.constant dense<0.000000e+00> : vector<16x128xf32>
    %22 = tpu.matmul %19, %21, %cst_26 {dimension_numbers = #tpu.dot_dimension_numbers<[1], [0], [0], [1], [0, 0, 1, 1], [], []>} : vector<16x64xf32>, vector<64x128xf32>, vector<16x128xf32> -> vector<16x128xf32>
    %23 = arith.addf %18, %22 : vector<16x128xf32>
    %c2 = arith.constant 2 : index
    %c0_27 = arith.constant 0 : index
    %24 = vector.load %arg6[%c2, %c0_27] : memref<18x64xf32, #tpu.memory_space<vmem>>, vector<16x64xf32>
    %c2_28 = arith.constant 2 : index
    %c0_29 = arith.constant 0 : index
    %c0_30 = arith.constant 0 : index
    %25 = vector.load %arg2[%c2_28, %c0_29, %c0_30] : memref<3x64x128xf32, #tpu.memory_space<vmem>>, vector<1x64x128xf32>
    %26 = vector.shape_cast %25 : vector<1x64x128xf32> to vector<64x128xf32>
    %cst_31 = arith.constant dense<0.000000e+00> : vector<16x128xf32>
    %27 = tpu.matmul %24, %26, %cst_31 {dimension_numbers = #tpu.dot_dimension_numbers<[1], [0], [0], [1], [0, 0, 1, 1], [], []>} : vector<16x64xf32>, vector<64x128xf32>, vector<16x128xf32> -> vector<16x128xf32>
    %28 = arith.addf %23, %27 : vector<16x128xf32>
    %29 = vector.extract_strided_slice %28 {offsets = [0, 0], sizes = [16, 64], strides = [1, 1]} : vector<16x128xf32> to vector<16x64xf32>
    %cst_32 = arith.constant 0.000000e+00 : f32
    %30 = vector.broadcast %cst_32 : f32 to vector<16x64xf32>
    %31 = arith.cmpf ogt, %29, %30 : vector<16x64xf32>
    %cst_33 = arith.constant 0.000000e+00 : f32
    %32 = vector.broadcast %cst_33 : f32 to vector<16x64xf32>
    %33 = arith.minimumf %29, %32 : vector<16x64xf32>
    %34 = math.exp %33 : vector<16x64xf32>
    %cst_34 = arith.constant 1.000000e+00 : f32
    %35 = vector.broadcast %cst_34 : f32 to vector<16x64xf32>
    %36 = arith.subf %34, %35 : vector<16x64xf32>
    %37 = arith.select %31, %29, %36 : vector<16x64xi1>, vector<16x64xf32>
    %38 = vector.extract_strided_slice %28 {offsets = [0, 64], sizes = [16, 64], strides = [1, 1]} : vector<16x128xf32> to vector<16x64xf32>
    %c1_35 = arith.constant 1 : index
    %c0_36 = arith.constant 0 : index
    %39 = vector.load %arg7[%c1_35, %c0_36] : memref<18x64xf32, #tpu.memory_space<vmem>>, vector<16x64xf32>
    tpu.vector_store %arg7[%c1_35, %c0_36], %37 {strides = array<i32>} : memref<18x64xf32, #tpu.memory_space<vmem>>, vector<16x64xf32>,
    %c0_37 = arith.constant 0 : index
    %c0_38 = arith.constant 0 : index
    %40 = vector.load %arg7[%c0_37, %c0_38] : memref<18x64xf32, #tpu.memory_space<vmem>>, vector<16x64xf32>
    %c0_39 = arith.constant 0 : index
    %c0_40 = arith.constant 0 : index
    %c0_41 = arith.constant 0 : index
    %41 = vector.load %arg4[%c0_39, %c0_40, %c0_41] : memref<3x64x64xf32, #tpu.memory_space<vmem>>, vector<1x64x64xf32>
    %42 = vector.shape_cast %41 : vector<1x64x64xf32> to vector<64x64xf32>
    %cst_42 = arith.constant dense<0.000000e+00> : vector<16x64xf32>
    %43 = tpu.matmul %40, %42, %cst_42 {dimension_numbers = #tpu.dot_dimension_numbers<[1], [0], [0], [1], [0, 0, 1, 1], [], []>} : vector<16x64xf32>, vector<64x64xf32>, vector<16x64xf32> -> vector<16x64xf32>
    %44 = arith.addf %38, %43 : vector<16x64xf32>
    %c1_43 = arith.constant 1 : index
    %c0_44 = arith.constant 0 : index
    %45 = vector.load %arg7[%c1_43, %c0_44] : memref<18x64xf32, #tpu.memory_space<vmem>>, vector<16x64xf32>
    %c1_45 = arith.constant 1 : index
    %c0_46 = arith.constant 0 : index
    %c0_47 = arith.constant 0 : index
    %46 = vector.load %arg4[%c1_45, %c0_46, %c0_47] : memref<3x64x64xf32, #tpu.memory_space<vmem>>, vector<1x64x64xf32>
    %47 = vector.shape_cast %46 : vector<1x64x64xf32> to vector<64x64xf32>
    %cst_48 = arith.constant dense<0.000000e+00> : vector<16x64xf32>
    %48 = tpu.matmul %45, %47, %cst_48 {dimension_numbers = #tpu.dot_dimension_numbers<[1], [0], [0], [1], [0, 0, 1, 1], [], []>} : vector<16x64xf32>, vector<64x64xf32>, vector<16x64xf32> -> vector<16x64xf32>
    %49 = arith.addf %44, %48 : vector<16x64xf32>
    %c2_49 = arith.constant 2 : index
    %c0_50 = arith.constant 0 : index
    %50 = vector.load %arg7[%c2_49, %c0_50] : memref<18x64xf32, #tpu.memory_space<vmem>>, vector<16x64xf32>
    %c2_51 = arith.constant 2 : index
    %c0_52 = arith.constant 0 : index
    %c0_53 = arith.constant 0 : index
    %51 = vector.load %arg4[%c2_51, %c0_52, %c0_53] : memref<3x64x64xf32, #tpu.memory_space<vmem>>, vector<1x64x64xf32>
    %52 = vector.shape_cast %51 : vector<1x64x64xf32> to vector<64x64xf32>
    %cst_54 = arith.constant dense<0.000000e+00> : vector<16x64xf32>
    %53 = tpu.matmul %50, %52, %cst_54 {dimension_numbers = #tpu.dot_dimension_numbers<[1], [0], [0], [1], [0, 0, 1, 1], [], []>} : vector<16x64xf32>, vector<64x64xf32>, vector<16x64xf32> -> vector<16x64xf32>
    %54 = arith.addf %49, %53 : vector<16x64xf32>
    %cst_55 = arith.constant 0.000000e+00 : f32
    %55 = vector.broadcast %cst_55 : f32 to vector<16x64xf32>
    %56 = arith.cmpf ogt, %54, %55 : vector<16x64xf32>
    %cst_56 = arith.constant 0.000000e+00 : f32
    %57 = vector.broadcast %cst_56 : f32 to vector<16x64xf32>
    %58 = arith.minimumf %54, %57 : vector<16x64xf32>
    %59 = math.exp %58 : vector<16x64xf32>
    %cst_57 = arith.constant 1.000000e+00 : f32
    %60 = vector.broadcast %cst_57 : f32 to vector<16x64xf32>
    %61 = arith.subf %59, %60 : vector<16x64xf32>
    %62 = arith.select %56, %54, %61 : vector<16x64xi1>, vector<16x64xf32>
    %63 = tpu.concatenate %37, %62 in 1 : vector<16x64xf32>, vector<16x64xf32> -> vector<16x128xf32>
    %c0_58 = arith.constant 0 : index
    %c0_59 = arith.constant 0 : index
    %c0_60 = arith.constant 0 : index
    %64 = vector.load %arg5[%c0_58, %c0_59, %c0_60] : memref<1x16x128xf32, #tpu.memory_space<vmem>>, vector<1x16x128xf32>
    %65 = vector.shape_cast %64 : vector<1x16x128xf32> to vector<16x128xf32>
    %66 = vector.shape_cast %63 : vector<16x128xf32> to vector<1x16x128xf32>
    tpu.vector_store %arg5[%c0_58, %c0_59, %c0_60], %66 {strides = array<i32>} : memref<1x16x128xf32, #tpu.memory_space<vmem>>, vector<1x16x128xf32>,
    return
  }
  func.func @transform_0(%arg0: i32) -> (i32, i32, i32) {
    %c0_i32 = arith.constant 0 : i32
    %c0_i32_0 = arith.constant 0 : i32
    %c0_i32_1 = arith.constant 0 : i32
    return %arg0, %c0_i32, %c0_i32_0 : i32, i32, i32
  }
  func.func @transform_1(%arg0: i32) -> (i32, i32, i32) {
    %c0_i32 = arith.constant 0 : i32
    %c0_i32_0 = arith.constant 0 : i32
    %c0_i32_1 = arith.constant 0 : i32
    %c0_i32_2 = arith.constant 0 : i32
    return %c0_i32, %c0_i32_0, %c0_i32_1 : i32, i32, i32
  }
  func.func @transform_2(%arg0: i32) -> (i32, i32) {
    %c0_i32 = arith.constant 0 : i32
    %c0_i32_0 = arith.constant 0 : i32
    %c0_i32_1 = arith.constant 0 : i32
    return %c0_i32, %c0_i32_0 : i32, i32
  }
  func.func @transform_3(%arg0: i32) -> (i32, i32, i32) {
    %c0_i32 = arith.constant 0 : i32
    %c0_i32_0 = arith.constant 0 : i32
    %c0_i32_1 = arith.constant 0 : i32
    %c0_i32_2 = arith.constant 0 : i32
    return %c0_i32, %c0_i32_0, %c0_i32_1 : i32, i32, i32
  }
  func.func @transform_4(%arg0: i32) -> (i32, i32, i32) {
    %c0_i32 = arith.constant 0 : i32
    %c0_i32_0 = arith.constant 0 : i32
    %c0_i32_1 = arith.constant 0 : i32
    return %arg0, %c0_i32, %c0_i32_0 : i32, i32, i32
  }
}

</mosaic_0001>

<llo_original>
// kernel: tile.13
$region0: #{tile.13}
  #allocation0 [shape = 's32[1]{0}', space=sflag, size = 0x4, scoped, tag = 'scoped memory for tile.13']
  %s0 = inlined_call_operand.vmem [shape: f32[4], index: 0, kind: input, shape index: {}]
  %s1 = inlined_call_operand.vmem [shape: f32[16,4], index: 1, kind: output, shape index: {}]
  // Predicated region
  $region2: #{tile.13} parent=0 // pred_check
    _
  $region3: #{tile.13} parent=0 // pred_check_branch
    %3 = sbr.rel (0) target = $region5
  $region4: #{tile.13} parent=0 // pred_region
    _
  $region5: #{tile.13} parent=0 // pred_fallthru
    _
  %v4 = vld [vmem:[%s0] ss:$0 sm:$0xff]
  %5 = vst [vmem:[%s1] sm:$0xff] %v4
  %s6 = scalar_lea.vmem %s1, 8
  %7 = vst [vmem:[%s6] sm:$0xff] %v4

// kernel: tile.14
$region0: #{tile.14}
  %s0 = inlined_call_operand.vmem [shape: f32[16,4], index: 0, kind: input, shape index: {}]
  %s1 = inlined_call_operand.vmem [shape: f32[64], index: 1, kind: output, shape index: {}]
  $region1: #{tile.14} parent=0
    #allocation0 [shape = 'u8[4096]{0}', space=vmem, size = 0x1000, scoped, tag = 'scoped mem for output reshape']
    %v2 = vld [vmem:[%s0] sm:$0x1]
    %vm3 = vcmask 31744
    %4 = vst.msk [vmem:[#allocation0] sm:$0x1] %vm3, %v2
    %s5 = scalar_lea.vmem %s0, 15
    %v6 = vld [vmem:[%s5] sm:$0x1]
    %7 = vrot.lane.b32.xlu0 %v6, 60
    %v8 = vpop.permute.xlu0 %7
    %vm9 = vcmask 523744
    %10 = vst.msk [vmem:[#allocation0] sm:$0x1] %vm9, %v8
    %s11 = scalar_lea.vmem %s0, 14
    %v12 = vld [vmem:[%s11] sm:$0x1]
    %13 = vrot.lane.b32.xlu0 %v12, 56
    %v14 = vpop.permute.xlu0 %13
    %vm15 = vcmask 490944
    %16 = vst.msk [vmem:[#allocation0] sm:$0x1] %vm15, %v14
    %s17 = scalar_lea.vmem %s0, 13
    %v18 = vld [vmem:[%s17] sm:$0x1]
    %19 = vrot.lane.b32.xlu0 %v18, 52
    %v20 = vpop.permute.xlu0 %19
    %vm21 = vcmask 458144
    %22 = vst.msk [vmem:[#allocation0] sm:$0x1] %vm21, %v20
    %s23 = scalar_lea.vmem %s0, 12
    %v24 = vld [vmem:[%s23] sm:$0x1]
    %25 = vrot.lane.b32.xlu0 %v24, 48
    %v26 = vpop.permute.xlu0 %25
    %vm27 = vcmask 425344
    %28 = vst.msk [vmem:[#allocation0] sm:$0x1] %vm27, %v26
    %s29 = scalar_lea.vmem %s0, 11
    %v30 = vld [vmem:[%s29] sm:$0x1]
    %31 = vrot.lane.b32.xlu0 %v30, 44
    %v32 = vpop.permute.xlu0 %31
    %vm33 = vcmask 392544
    %34 = vst.msk [vmem:[#allocation0] sm:$0x1] %vm33, %v32
    %s35 = scalar_lea.vmem %s0, 10
    %v36 = vld [vmem:[%s35] sm:$0x1]
    %37 = vrot.lane.b32.xlu0 %v36, 40
    %v38 = vpop.permute.xlu0 %37
    %vm39 = vcmask 359744
    %40 = vst.msk [vmem:[#allocation0] sm:$0x1] %vm39, %v38
    %s41 = scalar_lea.vmem %s0, 9
    %v42 = vld [vmem:[%s41] sm:$0x1]
    %43 = vrot.lane.b32.xlu0 %v42, 36
    %v44 = vpop.permute.xlu0 %43
    %vm45 = vcmask 326944
    %46 = vst.msk [vmem:[#allocation0] sm:$0x1] %vm45, %v44
    %s47 = scalar_lea.vmem %s0, 8
    %v48 = vld [vmem:[%s47] sm:$0x1]
    %49 = vrot.lane.b32.xlu0 %v48, 32
    %v50 = vpop.permute.xlu0 %49
    %vm51 = vcmask 294144
    %52 = vst.msk [vmem:[#allocation0] sm:$0x1] %vm51, %v50
    %s53 = scalar_lea.vmem %s0, 7
    %v54 = vld [vmem:[%s53] sm:$0x1]
    %55 = vrot.lane.b32.xlu0 %v54, 28
    %v56 = vpop.permute.xlu0 %55
    %vm57 = vcmask 261344
    %58 = vst.msk [vmem:[#allocation0] sm:$0x1] %vm57, %v56
    %s59 = scalar_lea.vmem %s0, 6
    %v60 = vld [vmem:[%s59] sm:$0x1]
    %61 = vrot.lane.b32.xlu0 %v60, 24
    %v62 = vpop.permute.xlu0 %61
    %vm63 = vcmask 228544
    %64 = vst.msk [vmem:[#allocation0] sm:$0x1] %vm63, %v62
    %s65 = scalar_lea.vmem %s0, 5
    %v66 = vld [vmem:[%s65] sm:$0x1]
    %67 = vrot.lane.b32.xlu0 %v66, 20
    %v68 = vpop.permute.xlu0 %67
    %vm69 = vcmask 195744
    %70 = vst.msk [vmem:[#allocation0] sm:$0x1] %vm69, %v68
    %s71 = scalar_lea.vmem %s0, 4
    %v72 = vld [vmem:[%s71] sm:$0x1]
    %73 = vrot.lane.b32.xlu0 %v72, 16
    %v74 = vpop.permute.xlu0 %73
    %vm75 = vcmask 162944
    %76 = vst.msk [vmem:[#allocation0] sm:$0x1] %vm75, %v74
    %s77 = scalar_lea.vmem %s0, 3
    %v78 = vld [vmem:[%s77] sm:$0x1]
    %79 = vrot.lane.b32.xlu0 %v78, 12
    %v80 = vpop.permute.xlu0 %79
    %vm81 = vcmask 130144
    %82 = vst.msk [vmem:[#allocation0] sm:$0x1] %vm81, %v80
    %s83 = scalar_lea.vmem %s0, 2
    %v84 = vld [vmem:[%s83] sm:$0x1]
    %85 = vrot.lane.b32.xlu0 %v84, 8
    %v86 = vpop.permute.xlu0 %85
    %vm87 = vcmask 97344
    %88 = vst.msk [vmem:[#allocation0] sm:$0x1] %vm87, %v86
    %s89 = scalar_lea.vmem %s0, 1
    %v90 = vld [vmem:[%s89] sm:$0x1]
    %91 = vrot.lane.b32.xlu0 %v90, 4
    %v92 = vpop.permute.xlu0 %91
    %vm93 = vcmask 64544
    %94 = vst.msk [vmem:[#allocation0] sm:$0x1] %vm93, %v92
    %s96 = sshll.u32 1, 1
    %s97 = ssub.s32 %s96, 1
    %v99 = vld [vmem:[#allocation0] sm:%s97]
    %s100 = sshll.u32 1, 1
    %s101 = ssub.s32 %s100, 1
    %102 = vst [vmem:[%s1] sm:%s101] %v99

// kernel: xcoder_forward_impl.1
$region0: #{xcoder_forward_impl.1}
  #allocation0 [shape = 'u32[]', space=smem, size = 0x4, offset = 0x4, fixed_abs, tag = 'smem constant byte address 0x4 - core index']
  #allocation1 [shape = 'u32[144,128]{1,0:T(1,128)}', space=vmem, size = 0x12000, scoped, tag = 'internal scratch']
  #allocation2 [shape = 'f32[18,64]{1,0:T(8,128)}', space=vmem, size = 0x3000, scoped, tag = 'scratch operand']
  #allocation3 [shape = 'f32[18,64]{1,0:T(8,128)}', space=vmem, size = 0x3000, scoped, tag = 'scratch operand']
  %s0 = inlined_call_operand.vmem [shape: f32[2,16,64], index: 0, kind: input, shape index: {}]
  %s1 = inlined_call_operand.vmem [shape: f32[3,64,128], index: 1, kind: input, shape index: {}]
  %s2 = inlined_call_operand.vmem [shape: f32[1,128], index: 2, kind: input, shape index: {}]
  %s3 = inlined_call_operand.vmem [shape: f32[3,64,64], index: 3, kind: input, shape index: {}]
  %s4 = inlined_call_operand.vmem [shape: f32[2,16,128], index: 4, kind: output, shape index: {}]
  %s5 = sld [smem:[#allocation0]]
  $region49: #{xcoder_forward_impl.1} parent=0
    _
  %s7 = ssub.s32 1, %s5
  %s8 = scalar_select 0, %s7, %s5
  loop: start=0, step=1, limit=4
  $region2: #{xcoder_forward_impl.1} parent=0 // loop_pre_header
    _
  $region3: #{xcoder_forward_impl.1} parent=0 // loop_header
    %s10 = sphi 0, %s14
    %p11 = scmp.ge.s32.totalorder %s10, 4
    %s20 = sphi 0, %s22
    %s23 = sphi 0, %s20
    %s24 = sphi 0, %s23
    %s40 = sphi 0, %s24
    %s44 = sphi 0, %s44
    %s46 = sphi 0, %s44
    %s47 = sphi 0, %s46
    %s61 = sphi 0, %s47
    %s65 = sphi 0, %s65
    %s67 = sphi 0, %s65
    %s68 = sphi 0, %s67
    %s82 = sphi 0, %s68
    %s86 = sphi 0, %s86
    %s88 = sphi 0, %s86
    %s89 = sphi 0, %s88
    %s103 = sphi 0, %s89
    %s109 = sphi 0, %s111
    %s112 = sphi 0, %s109
    %s113 = sphi 0, %s112
    %s129 = sphi 0, %s113
  $region4: #{xcoder_forward_impl.1} parent=0 // loop_header_branch
    %13 = sbr.rel (%p11) target = $region8
  $region5: #{xcoder_forward_impl.1} parent=0 // loop_body
    %s15 = ssub.s32 %s10, 1
    %s16 = ssub.s32 %s10, 2
    %s17 = sadd.s32 %s10, 1
    %s18 = ssub.s32 %s10, %s17
    %p19 = scmp.eq.s32.totalorder %s18, 0
    %s21 = sadd.s32 %s20, 1
    %s22 = scalar_select %p19, %s20, %s21
    %p25 = pneg %p19
    %p26 = scmp.eq.s32.totalorder %s10, 1
    %p27 = por %p25, %p26
    %p28 = scmp.ne.s32.totalorder %s20, %s23
    %p29 = scmp.eq.s32.totalorder %s10, 0
    %p30 = por %p28, %p29
    %p31 = scmp.ne.s32.totalorder %s20, %s23
    %p32 = scmp.eq.s32.totalorder %s15, 1
    %p33 = por %p31, %p32
    %p34 = scmp.ne.s32.totalorder %s23, %s24
    %p35 = scmp.eq.s32.totalorder %s15, 0
    %p36 = por %p34, %p35
    %p37 = scmp.ne.s32.totalorder %s23, %s24
    %p38 = scmp.eq.s32.totalorder %s16, 1
    %p39 = por %p37, %p38
    %p41 = scmp.ne.s32.totalorder %s24, %s40
    %p42 = scmp.eq.s32.totalorder %s16, 0
    %p43 = por %p41, %p42
    %s45 = sadd.s32 %s44, 1
    %p48 = scmp.eq.s32.totalorder %s10, 1
    %p49 = scmp.ne.s32.totalorder %s44, %s46
    %p50 = scmp.eq.s32.totalorder %s10, 0
    %p51 = por %p49, %p50
    %p52 = scmp.ne.s32.totalorder %s44, %s46
    %p53 = scmp.eq.s32.totalorder %s15, 1
    %p54 = por %p52, %p53
    %p55 = scmp.ne.s32.totalorder %s46, %s47
    %p56 = scmp.eq.s32.totalorder %s15, 0
    %p57 = por %p55, %p56
    %p58 = scmp.ne.s32.totalorder %s46, %s47
    %p59 = scmp.eq.s32.totalorder %s16, 1
    %p60 = por %p58, %p59
    %p62 = scmp.ne.s32.totalorder %s47, %s61
    %p63 = scmp.eq.s32.totalorder %s16, 0
    %p64 = por %p62, %p63
    %s66 = sadd.s32 %s65, 1
    %p69 = scmp.eq.s32.totalorder %s10, 1
    %p70 = scmp.ne.s32.totalorder %s65, %s67
    %p71 = scmp.eq.s32.totalorder %s10, 0
    %p72 = por %p70, %p71
    %p73 = scmp.ne.s32.totalorder %s65, %s67
    %p74 = scmp.eq.s32.totalorder %s15, 1
    %p75 = por %p73, %p74
    %p76 = scmp.ne.s32.totalorder %s67, %s68
    %p77 = scmp.eq.s32.totalorder %s15, 0
    %p78 = por %p76, %p77
    %p79 = scmp.ne.s32.totalorder %s67, %s68
    %p80 = scmp.eq.s32.totalorder %s16, 1
    %p81 = por %p79, %p80
    %p83 = scmp.ne.s32.totalorder %s68, %s82
    %p84 = scmp.eq.s32.totalorder %s16, 0
    %p85 = por %p83, %p84
    %s87 = sadd.s32 %s86, 1
    %p90 = scmp.eq.s32.totalorder %s10, 1
    %p91 = scmp.ne.s32.totalorder %s86, %s88
    %p92 = scmp.eq.s32.totalorder %s10, 0
    %p93 = por %p91, %p92
    %p94 = scmp.ne.s32.totalorder %s86, %s88
    %p95 = scmp.eq.s32.totalorder %s15, 1
    %p96 = por %p94, %p95
    %p97 = scmp.ne.s32.totalorder %s88, %s89
    %p98 = scmp.eq.s32.totalorder %s15, 0
    %p99 = por %p97, %p98
    %p100 = scmp.ne.s32.totalorder %s88, %s89
    %p101 = scmp.eq.s32.totalorder %s16, 1
    %p102 = por %p100, %p101
    %p104 = scmp.ne.s32.totalorder %s89, %s103
    %p105 = scmp.eq.s32.totalorder %s16, 0
    %p106 = por %p104, %p105
    %s107 = ssub.s32 %s10, %s17
    %p108 = scmp.eq.s32.totalorder %s107, 0
    %s110 = sadd.s32 %s109, 1
    %s111 = scalar_select %p108, %s109, %s110
    %p114 = pneg %p108
    %p115 = scmp.eq.s32.totalorder %s10, 1
    %p116 = por %p114, %p115
    %p117 = scmp.ne.s32.totalorder %s109, %s112
    %p118 = scmp.eq.s32.totalorder %s10, 0
    %p119 = por %p117, %p118
    %p120 = scmp.ne.s32.totalorder %s109, %s112
    %p121 = scmp.eq.s32.totalorder %s15, 1
    %p122 = por %p120, %p121
    %p123 = scmp.ne.s32.totalorder %s112, %s113
    %p124 = scmp.eq.s32.totalorder %s15, 0
    %p125 = por %p123, %p124
    %p126 = scmp.ne.s32.totalorder %s112, %s113
    %p127 = scmp.eq.s32.totalorder %s16, 1
    %p128 = por %p126, %p127
    %p130 = scmp.ne.s32.totalorder %s113, %s129
    %p131 = scmp.eq.s32.totalorder %s16, 0
    %p132 = por %p130, %p131
    %p133 = scmp.le.s32.totalorder 1, %s10
    %p134 = scmp.lt.s32.totalorder %s10, 3
    %p135 = pnand %p133, %p134
    %p136 = pneg %p135
    // Predicated region
    $region9: #{xcoder_forward_impl.1} parent=5 // pred_check
      _
    $region10: #{xcoder_forward_impl.1} parent=5 // pred_check_branch
      %138 = sbr.rel (%p135) target = $region12
    $region11: #{xcoder_forward_impl.1} parent=5 // pred_region
      %s139 = ssub.s32 %s10, 1
      // Predicated region
      $region13: #{xcoder_forward_impl.1} parent=11 // pred_check
        %p140 = pneg %p57
      $region14: #{xcoder_forward_impl.1} parent=11 // pred_check_branch
        %142 = sbr.rel (%p140) target = $region16
      $region15: #{xcoder_forward_impl.1} parent=11 // pred_region
        _
      $region16: #{xcoder_forward_impl.1} parent=11 // pred_fallthru
        _
      // Predicated region
      $region17: #{xcoder_forward_impl.1} parent=11 // pred_check
        %p143 = pneg %p78
      $region18: #{xcoder_forward_impl.1} parent=11 // pred_check_branch
        %145 = sbr.rel (%p143) target = $region20
      $region19: #{xcoder_forward_impl.1} parent=11 // pred_region
        _
      $region20: #{xcoder_forward_impl.1} parent=11 // pred_fallthru
        _
      // Predicated region
      $region21: #{xcoder_forward_impl.1} parent=11 // pred_check
        %p146 = pneg %p99
      $region22: #{xcoder_forward_impl.1} parent=11 // pred_check_branch
        %148 = sbr.rel (%p146) target = $region24
      $region23: #{xcoder_forward_impl.1} parent=11 // pred_region
        _
      $region24: #{xcoder_forward_impl.1} parent=11 // pred_fallthru
        _
    $region12: #{xcoder_forward_impl.1} parent=5 // pred_fallthru
      _
    %p149 = scmp.lt.s32.totalorder %s10, 2
    // Predicated region
    $region25: #{xcoder_forward_impl.1} parent=5 // pred_check
      %p150 = pneg %p149
    $region26: #{xcoder_forward_impl.1} parent=5 // pred_check_branch
      %152 = sbr.rel (%p150) target = $region28
    $region27: #{xcoder_forward_impl.1} parent=5 // pred_region
      // Predicated region
      $region29: #{xcoder_forward_impl.1} parent=27 // pred_check
        %p153 = pneg %p30
      $region30: #{xcoder_forward_impl.1} parent=27 // pred_check_branch
        %155 = sbr.rel (%p153) target = $region32
      $region31: #{xcoder_forward_impl.1} parent=27 // pred_region
        %p156 = scmp.lt.s32.totalorder %s10, 1
        %s157 = scalar_select %p156, %s10, 1
        %s158 = smul.addr %s157, 2
        %s159 = smul.addr %s158, 8
        %s160 = scalar_lea.vmem %s0, %s159
      $region32: #{xcoder_forward_impl.1} parent=27 // pred_fallthru
        _
    $region28: #{xcoder_forward_impl.1} parent=5 // pred_fallthru
      _
    %p161 = scmp.le.s32.totalorder 1, %s10
    %p162 = scmp.lt.s32.totalorder %s10, 3
    %p163 = pnand %p161, %p162
    %p164 = pneg %p163
    // Predicated region
    $region33: #{xcoder_forward_impl.1} parent=5 // pred_check
      _
    $region34: #{xcoder_forward_impl.1} parent=5 // pred_check_branch
      %166 = sbr.rel (%p163) target = $region36
    $region35: #{xcoder_forward_impl.1} parent=5 // pred_region
      %s167 = ssub.s32 %s10, 1
      %p168 = scmp.lt.s32.totalorder %s15, 1
      %s169 = scalar_select %p168, %s15, 1
      %s170 = smul.addr %s169, 2
      %s171 = smul.addr %s170, 8
      %s172 = scalar_lea.vmem %s0, %s171
      %p173 = pneg %p36
      %p174 = pneg %p33
      %p175 = pneg %p57
      %p176 = pneg %p54
      %p177 = pneg %p78
      %p178 = pneg %p75
      %p179 = pneg %p99
      %p180 = pneg %p96
      %p181 = pneg %p125
      %p182 = pneg %p122
      %p183 = scmp.lt.s32.totalorder %s15, 1
      %s184 = scalar_select %p183, %s15, 1
      %s185 = smul.addr %s184, 2
      %s186 = smul.addr %s185, 8
      %s187 = scalar_lea.vmem %s4, %s186
      %p188 = scmp.lt.s32.totalorder %s15, 1
      %s189 = scalar_select %p188, %s15, 1
      %s190 = smul.addr %s189, 2
      %s191 = smul.addr %s190, 8
      %s192 = scalar_lea.vmem %s0, %s191
      %p193 = scmp.lt.s32.totalorder %s15, 1
      %s194 = scalar_select %p193, %s15, 1
      %s195 = smul.addr %s194, 2
      %s196 = smul.addr %s195, 8
      %s197 = scalar_lea.vmem %s4, %s196
      %vm198 = vcmask 516096
      %199 = vst.msk [vmem:[#allocation2] sm:$0x1] %vm198, 0.0
      %200 = vst.msk [vmem:[#allocation3] sm:$0x1] %vm198, 0.0
      %201 = vst.msk [vmem:[#allocation2 + $0x11] sm:$0x1] %vm198, 0.0
      %202 = vst.msk [vmem:[#allocation3 + $0x11] sm:$0x1] %vm198, 0.0
      %v203 = vld [vmem:[%s192] sm:$0xff]
      %v204 = vld [vmem:[%s192 + $0x8] sm:$0xff]
      %vm205 = vcmask 523264
      %206 = vst.msk [vmem:[#allocation2 + $0x1] sm:$0xff] %vm205, %v203
      %207 = vst.msk [vmem:[#allocation2 + $0x9] sm:$0xff] %vm205, %v204
      %v208 = vld [vmem:[%s2] sm:$0x1]
      %v210 = vlaneseq
      %v211 = vshrl.u32 %v210, 7
      %v212 = vsub.s32 0, %v211
      %v213 = vrot.slane %v208, %v212
      %v215 = vld [vmem:[#allocation2] sm:$0xff]
      %v216 = vld [vmem:[#allocation2 + $0x8] sm:$0xff]
      %v217 = vld [vmem:[%s1] sm:$0xff]
      %v218 = vld [vmem:[%s1 + $0x8] sm:$0xff]
      %v219 = vld [vmem:[%s1 + $0x10] sm:$0xff]
      %v220 = vld [vmem:[%s1 + $0x18] sm:$0xff]
      %v221 = vld [vmem:[%s1 + $0x20] sm:$0xff]
      %v222 = vld [vmem:[%s1 + $0x28] sm:$0xff]
      %v223 = vld [vmem:[%s1 + $0x30] sm:$0xff]
      %v224 = vld [vmem:[%s1 + $0x38] sm:$0xff]
      %v226 = vsel %vm205, %v215, 0
      %v229 = vsel %vm205, %v216, 0
      %231 = vmatprep.subr.mxu0 0.0
      %232 = vmatpush1.msra.mxu0 0.0
      %233 = vmatprep.subr.mxu0 0.0
      %234 = vmatpush1.msra.mxu0 0.0
      %235 = vmatprep.subr.mxu0 0.0
      %236 = vmatpush1.msra.mxu0 0.0
      %237 = vmatprep.subr.mxu0 0.0
      %238 = vmatpush1.msra.mxu0 0.0
      %239 = vmatprep.subr.mxu0 0.0
      %240 = vmatpush1.msra.mxu0 0.0
      %241 = vmatprep.subr.mxu0 0.0
      %242 = vmatpush1.msra.mxu0 0.0
      %243 = vmatprep.subr.mxu0 0.0
      %244 = vmatpush1.msra.mxu0 0.0
      %245 = vmatprep.subr.mxu0 0.0
      %246 = vmatpush1.msra.mxu0 0.0
      %247 = vmatprep.subr.mxu0 0.0
      %248 = vmatpush1.msra.mxu0 %v224
      %249 = vmatprep.subr.mxu0 0.0
      %250 = vmatpush1.msra.mxu0 %v223
      %251 = vmatprep.subr.mxu0 0.0
      %252 = vmatpush1.msra.mxu0 %v222
      %253 = vmatprep.subr.mxu0 0.0
      %254 = vmatpush1.msra.mxu0 %v221
      %255 = vmatprep.subr.mxu0 0.0
      %256 = vmatpush1.msra.mxu0 %v220
      %257 = vmatprep.subr.mxu0 0.0
      %258 = vmatpush1.msra.mxu0 %v219
      %259 = vmatprep.subr.mxu0 0.0
      %260 = vmatpush1.msra.mxu0 %v218
      %261 = vmatprep.subr.mxu0 0.0
      %262 = vmatpush1.msra.mxu0 %v217
      %263 = vmatprep.subr.mxu0 0.0
      %264 = vmatpush2.msra.mxu0 0.0
      %265 = vmatprep.subr.mxu0 0.0
      %266 = vmatpush2.msra.mxu0 0.0
      %267 = vmatprep.subr.mxu0 0.0
      %268 = vmatpush2.msra.mxu0 0.0
      %269 = vmatprep.subr.mxu0 0.0
      %270 = vmatpush2.msra.mxu0 0.0
      %271 = vmatprep.subr.mxu0 0.0
      %272 = vmatpush2.msra.mxu0 0.0
      %273 = vmatprep.subr.mxu0 0.0
      %274 = vmatpush2.msra.mxu0 0.0
      %275 = vmatprep.subr.mxu0 0.0
      %276 = vmatpush2.msra.mxu0 0.0
      %277 = vmatprep.subr.mxu0 0.0
      %278 = vmatpush2.msra.mxu0 0.0
      %279 = vmatprep.subr.mxu0 0.0
      %280 = vmatpush2.msra.mxu0 0.0
      %281 = vmatprep.subr.mxu0 0.0
      %282 = vmatpush2.msra.mxu0 0.0
      %283 = vmatprep.subr.mxu0 0.0
      %284 = vmatpush2.msra.mxu0 0.0
      %285 = vmatprep.subr.mxu0 0.0
      %286 = vmatpush2.msra.mxu0 0.0
      %287 = vmatprep.subr.mxu0 0.0
      %288 = vmatpush2.msra.mxu0 0.0
      %289 = vmatprep.subr.mxu0 0.0
      %290 = vmatpush2.msra.mxu0 0.0
      %291 = vmatprep.subr.mxu0 0.0
      %292 = vmatpush2.msra.mxu0 0.0
      %293 = vmatprep.subr.mxu0 0.0
      %294 = vmatpush2.msra.mxu0 0.0
      %295 = vmatprep.mubr.f32.mxu0 0.0
      %296 = vmatmul.mubr.f32.gmra.mxu0 %v226
      %v297 = vpop.f32.mrf.mxu0
      %v298 = vadd.f32 0.0, %v297
      %v299 = vpop.f32.mrf.mxu0
      %300 = vmatprep.mubr.f32.mxu0 0.0
      %301 = vmatmul.mubr.f32.gmra.mxu0 %v229
      %v302 = vpop.f32.mrf.mxu0
      %v303 = vadd.f32 0.0, %v302
      %v304 = vpop.f32.mrf.mxu0
      %305 = vdwg.mxu0
      %v306 = vadd.f32 %v213, %v298
      %v307 = vadd.f32 %v213, %v303
      %v308 = vld [vmem:[#allocation2 + $0x1] sm:$0xff]
      %v309 = vld [vmem:[#allocation2 + $0x9] sm:$0xff]
      %s310 = scalar_lea.vmem %s1, 64
      %v311 = vld [vmem:[%s310] sm:$0xff]
      %v312 = vld [vmem:[%s310 + $0x8] sm:$0xff]
      %v313 = vld [vmem:[%s310 + $0x10] sm:$0xff]
      %v314 = vld [vmem:[%s310 + $0x18] sm:$0xff]
      %v315 = vld [vmem:[%s310 + $0x20] sm:$0xff]
      %v316 = vld [vmem:[%s310 + $0x28] sm:$0xff]
      %v317 = vld [vmem:[%s310 + $0x30] sm:$0xff]
      %v318 = vld [vmem:[%s310 + $0x38] sm:$0xff]
      %v320 = vsel %vm205, %v308, 0
      %v323 = vsel %vm205, %v309, 0
      %325 = vmatprep.subr.mxu0 0.0
      %326 = vmatpush1.msra.mxu0 0.0
      %327 = vmatprep.subr.mxu0 0.0
      %328 = vmatpush1.msra.mxu0 0.0
      %329 = vmatprep.subr.mxu0 0.0
      %330 = vmatpush1.msra.mxu0 0.0
      %331 = vmatprep.subr.mxu0 0.0
      %332 = vmatpush1.msra.mxu0 0.0
      %333 = vmatprep.subr.mxu0 0.0
      %334 = vmatpush1.msra.mxu0 0.0
      %335 = vmatprep.subr.mxu0 0.0
      %336 = vmatpush1.msra.mxu0 0.0
      %337 = vmatprep.subr.mxu0 0.0
      %338 = vmatpush1.msra.mxu0 0.0
      %339 = vmatprep.subr.mxu0 0.0
      %340 = vmatpush1.msra.mxu0 0.0
      %341 = vmatprep.subr.mxu0 0.0
      %342 = vmatpush1.msra.mxu0 %v318
      %343 = vmatprep.subr.mxu0 0.0
      %344 = vmatpush1.msra.mxu0 %v317
      %345 = vmatprep.subr.mxu0 0.0
      %346 = vmatpush1.msra.mxu0 %v316
      %347 = vmatprep.subr.mxu0 0.0
      %348 = vmatpush1.msra.mxu0 %v315
      %349 = vmatprep.subr.mxu0 0.0
      %350 = vmatpush1.msra.mxu0 %v314
      %351 = vmatprep.subr.mxu0 0.0
      %352 = vmatpush1.msra.mxu0 %v313
      %353 = vmatprep.subr.mxu0 0.0
      %354 = vmatpush1.msra.mxu0 %v312
      %355 = vmatprep.subr.mxu0 0.0
      %356 = vmatpush1.msra.mxu0 %v311
      %357 = vmatprep.subr.mxu0 0.0
      %358 = vmatpush2.msra.mxu0 0.0
      %359 = vmatprep.subr.mxu0 0.0
      %360 = vmatpush2.msra.mxu0 0.0
      %361 = vmatprep.subr.mxu0 0.0
      %362 = vmatpush2.msra.mxu0 0.0
      %363 = vmatprep.subr.mxu0 0.0
      %364 = vmatpush2.msra.mxu0 0.0
      %365 = vmatprep.subr.mxu0 0.0
      %366 = vmatpush2.msra.mxu0 0.0
      %367 = vmatprep.subr.mxu0 0.0
      %368 = vmatpush2.msra.mxu0 0.0
      %369 = vmatprep.subr.mxu0 0.0
      %370 = vmatpush2.msra.mxu0 0.0
      %371 = vmatprep.subr.mxu0 0.0
      %372 = vmatpush2.msra.mxu0 0.0
      %373 = vmatprep.subr.mxu0 0.0
      %374 = vmatpush2.msra.mxu0 0.0
      %375 = vmatprep.subr.mxu0 0.0
      %376 = vmatpush2.msra.mxu0 0.0
      %377 = vmatprep.subr.mxu0 0.0
      %378 = vmatpush2.msra.mxu0 0.0
      %379 = vmatprep.subr.mxu0 0.0
      %380 = vmatpush2.msra.mxu0 0.0
      %381 = vmatprep.subr.mxu0 0.0
      %382 = vmatpush2.msra.mxu0 0.0
      %383 = vmatprep.subr.mxu0 0.0
      %384 = vmatpush2.msra.mxu0 0.0
      %385 = vmatprep.subr.mxu0 0.0
      %386 = vmatpush2.msra.mxu0 0.0
      %387 = vmatprep.subr.mxu0 0.0
      %388 = vmatpush2.msra.mxu0 0.0
      %389 = vmatprep.mubr.f32.mxu0 0.0
      %390 = vmatmul.mubr.f32.gmra.mxu0 %v320
      %v391 = vpop.f32.mrf.mxu0
      %v392 = vadd.f32 0.0, %v391
      %v393 = vpop.f32.mrf.mxu0
      %394 = vmatprep.mubr.f32.mxu0 0.0
      %395 = vmatmul.mubr.f32.gmra.mxu0 %v323
      %v396 = vpop.f32.mrf.mxu0
      %v397 = vadd.f32 0.0, %v396
      %v398 = vpop.f32.mrf.mxu0
      %399 = vdwg.mxu0
      %v400 = vadd.f32 %v306, %v392
      %v401 = vadd.f32 %v307, %v397
      %v402 = vld [vmem:[#allocation2 + $0x2] sm:$0xff]
      %v403 = vld [vmem:[#allocation2 + $0xa] sm:$0xff]
      %s404 = scalar_lea.vmem %s1, 128
      %v405 = vld [vmem:[%s404] sm:$0xff]
      %v406 = vld [vmem:[%s404 + $0x8] sm:$0xff]
      %v407 = vld [vmem:[%s404 + $0x10] sm:$0xff]
      %v408 = vld [vmem:[%s404 + $0x18] sm:$0xff]
      %v409 = vld [vmem:[%s404 + $0x20] sm:$0xff]
      %v410 = vld [vmem:[%s404 + $0x28] sm:$0xff]
      %v411 = vld [vmem:[%s404 + $0x30] sm:$0xff]
      %v412 = vld [vmem:[%s404 + $0x38] sm:$0xff]
      %v414 = vsel %vm205, %v402, 0
      %v417 = vsel %vm205, %v403, 0
      %419 = vmatprep.subr.mxu0 0.0
      %420 = vmatpush1.msra.mxu0 0.0
      %421 = vmatprep.subr.mxu0 0.0
      %422 = vmatpush1.msra.mxu0 0.0
      %423 = vmatprep.subr.mxu0 0.0
      %424 = vmatpush1.msra.mxu0 0.0
      %425 = vmatprep.subr.mxu0 0.0
      %426 = vmatpush1.msra.mxu0 0.0
      %427 = vmatprep.subr.mxu0 0.0
      %428 = vmatpush1.msra.mxu0 0.0
      %429 = vmatprep.subr.mxu0 0.0
      %430 = vmatpush1.msra.mxu0 0.0
      %431 = vmatprep.subr.mxu0 0.0
      %432 = vmatpush1.msra.mxu0 0.0
      %433 = vmatprep.subr.mxu0 0.0
      %434 = vmatpush1.msra.mxu0 0.0
      %435 = vmatprep.subr.mxu0 0.0
      %436 = vmatpush1.msra.mxu0 %v412
      %437 = vmatprep.subr.mxu0 0.0
      %438 = vmatpush1.msra.mxu0 %v411
      %439 = vmatprep.subr.mxu0 0.0
      %440 = vmatpush1.msra.mxu0 %v410
      %441 = vmatprep.subr.mxu0 0.0
      %442 = vmatpush1.msra.mxu0 %v409
      %443 = vmatprep.subr.mxu0 0.0
      %444 = vmatpush1.msra.mxu0 %v408
      %445 = vmatprep.subr.mxu0 0.0
      %446 = vmatpush1.msra.mxu0 %v407
      %447 = vmatprep.subr.mxu0 0.0
      %448 = vmatpush1.msra.mxu0 %v406
      %449 = vmatprep.subr.mxu0 0.0
      %450 = vmatpush1.msra.mxu0 %v405
      %451 = vmatprep.subr.mxu0 0.0
      %452 = vmatpush2.msra.mxu0 0.0
      %453 = vmatprep.subr.mxu0 0.0
      %454 = vmatpush2.msra.mxu0 0.0
      %455 = vmatprep.subr.mxu0 0.0
      %456 = vmatpush2.msra.mxu0 0.0
      %457 = vmatprep.subr.mxu0 0.0
      %458 = vmatpush2.msra.mxu0 0.0
      %459 = vmatprep.subr.mxu0 0.0
      %460 = vmatpush2.msra.mxu0 0.0
      %461 = vmatprep.subr.mxu0 0.0
      %462 = vmatpush2.msra.mxu0 0.0
      %463 = vmatprep.subr.mxu0 0.0
      %464 = vmatpush2.msra.mxu0 0.0
      %465 = vmatprep.subr.mxu0 0.0
      %466 = vmatpush2.msra.mxu0 0.0
      %467 = vmatprep.subr.mxu0 0.0
      %468 = vmatpush2.msra.mxu0 0.0
      %469 = vmatprep.subr.mxu0 0.0
      %470 = vmatpush2.msra.mxu0 0.0
      %471 = vmatprep.subr.mxu0 0.0
      %472 = vmatpush2.msra.mxu0 0.0
      %473 = vmatprep.subr.mxu0 0.0
      %474 = vmatpush2.msra.mxu0 0.0
      %475 = vmatprep.subr.mxu0 0.0
      %476 = vmatpush2.msra.mxu0 0.0
      %477 = vmatprep.subr.mxu0 0.0
      %478 = vmatpush2.msra.mxu0 0.0
      %479 = vmatprep.subr.mxu0 0.0
      %480 = vmatpush2.msra.mxu0 0.0
      %481 = vmatprep.subr.mxu0 0.0
      %482 = vmatpush2.msra.mxu0 0.0
      %483 = vmatprep.mubr.f32.mxu0 0.0
      %484 = vmatmul.mubr.f32.gmra.mxu0 %v414
      %v485 = vpop.f32.mrf.mxu0
      %v486 = vadd.f32 0.0, %v485
      %v487 = vpop.f32.mrf.mxu0
      %488 = vmatprep.mubr.f32.mxu0 0.0
      %489 = vmatmul.mubr.f32.gmra.mxu0 %v417
      %v490 = vpop.f32.mrf.mxu0
      %v491 = vadd.f32 0.0, %v490
      %v492 = vpop.f32.mrf.mxu0
      %493 = vdwg.mxu0
      %v494 = vadd.f32 %v400, %v486
      %v495 = vadd.f32 %v401, %v491
      %vm496 = vcmp.gt.f32.partialorder %v494, 0.0
      %vm497 = vcmp.gt.f32.partialorder %v495, 0.0
      %v498 = vmin.f32 %v494, 0.0
      %v499 = vmin.f32 %v495, 0.0
      %v500 = vmul.f32 %v498, 1.442695
      %v501 = vpow.pop %v500
      %v502 = vmul.f32 %v499, 1.442695
      %v503 = vpow.pop %v502
      %v504 = vsub.f32 %v501, 1.0
      %v505 = vsub.f32 %v503, 1.0
      %v506 = vsel %vm496, %v494, %v504
      %v507 = vsel %vm497, %v495, %v505
      %508 = vst.msk [vmem:[#allocation3 + $0x1] sm:$0xff] %vm205, %v506
      %509 = vst.msk [vmem:[#allocation3 + $0x9] sm:$0xff] %vm205, %v507
      %v510 = vld [vmem:[#allocation3] sm:$0xff]
      %v511 = vld [vmem:[#allocation3 + $0x8] sm:$0xff]
      %v512 = vld [vmem:[%s3] sm:$0xff]
      %v513 = vld [vmem:[%s3 + $0x8] sm:$0xff]
      %v514 = vld [vmem:[%s3 + $0x10] sm:$0xff]
      %v515 = vld [vmem:[%s3 + $0x18] sm:$0xff]
      %v516 = vld [vmem:[%s3 + $0x20] sm:$0xff]
      %v517 = vld [vmem:[%s3 + $0x28] sm:$0xff]
      %v518 = vld [vmem:[%s3 + $0x30] sm:$0xff]
      %v519 = vld [vmem:[%s3 + $0x38] sm:$0xff]
      %v521 = vsel %vm205, %v510, 0
      %v524 = vsel %vm205, %v511, 0
      %526 = vmatprep.subr.mxu0 0.0
      %527 = vmatpush1.msra.mxu0 0.0
      %528 = vmatprep.subr.mxu0 0.0
      %529 = vmatpush1.msra.mxu0 0.0
      %530 = vmatprep.subr.mxu0 0.0
      %531 = vmatpush1.msra.mxu0 0.0
      %532 = vmatprep.subr.mxu0 0.0
      %533 = vmatpush1.msra.mxu0 0.0
      %534 = vmatprep.subr.mxu0 0.0
      %535 = vmatpush1.msra.mxu0 0.0
      %536 = vmatprep.subr.mxu0 0.0
      %537 = vmatpush1.msra.mxu0 0.0
      %538 = vmatprep.subr.mxu0 0.0
      %539 = vmatpush1.msra.mxu0 0.0
      %540 = vmatprep.subr.mxu0 0.0
      %541 = vmatpush1.msra.mxu0 0.0
      %542 = vmatprep.subr.mxu0 0.0
      %543 = vmatpush1.msra.mxu0 %v519
      %544 = vmatprep.subr.mxu0 0.0
      %545 = vmatpush1.msra.mxu0 %v518
      %546 = vmatprep.subr.mxu0 0.0
      %547 = vmatpush1.msra.mxu0 %v517
      %548 = vmatprep.subr.mxu0 0.0
      %549 = vmatpush1.msra.mxu0 %v516
      %550 = vmatprep.subr.mxu0 0.0
      %551 = vmatpush1.msra.mxu0 %v515
      %552 = vmatprep.subr.mxu0 0.0
      %553 = vmatpush1.msra.mxu0 %v514
      %554 = vmatprep.subr.mxu0 0.0
      %555 = vmatpush1.msra.mxu0 %v513
      %556 = vmatprep.subr.mxu0 0.0
      %557 = vmatpush1.msra.mxu0 %v512
      %558 = vmatprep.subr.mxu0 0.0
      %559 = vmatpush2.msra.mxu0 0.0
      %560 = vmatprep.subr.mxu0 0.0
      %561 = vmatpush2.msra.mxu0 0.0
      %562 = vmatprep.subr.mxu0 0.0
      %563 = vmatpush2.msra.mxu0 0.0
      %564 = vmatprep.subr.mxu0 0.0
      %565 = vmatpush2.msra.mxu0 0.0
      %566 = vmatprep.subr.mxu0 0.0
      %567 = vmatpush2.msra.mxu0 0.0
      %568 = vmatprep.subr.mxu0 0.0
      %569 = vmatpush2.msra.mxu0 0.0
      %570 = vmatprep.subr.mxu0 0.0
      %571 = vmatpush2.msra.mxu0 0.0
      %572 = vmatprep.subr.mxu0 0.0
      %573 = vmatpush2.msra.mxu0 0.0
      %574 = vmatprep.subr.mxu0 0.0
      %575 = vmatpush2.msra.mxu0 0.0
      %576 = vmatprep.subr.mxu0 0.0
      %577 = vmatpush2.msra.mxu0 0.0
      %578 = vmatprep.subr.mxu0 0.0
      %579 = vmatpush2.msra.mxu0 0.0
      %580 = vmatprep.subr.mxu0 0.0
      %581 = vmatpush2.msra.mxu0 0.0
      %582 = vmatprep.subr.mxu0 0.0
      %583 = vmatpush2.msra.mxu0 0.0
      %584 = vmatprep.subr.mxu0 0.0
      %585 = vmatpush2.msra.mxu0 0.0
      %586 = vmatprep.subr.mxu0 0.0
      %587 = vmatpush2.msra.mxu0 0.0
      %588 = vmatprep.subr.mxu0 0.0
      %589 = vmatpush2.msra.mxu0 0.0
      %590 = vmatprep.mubr.f32.mxu0 0.0
      %591 = vmatmul.mubr.f32.gmra.mxu0 %v521
      %v592 = vpop.f32.mrf.mxu0
      %v593 = vadd.f32 0.0, %v592
      %v594 = vpop.f32.mrf.mxu0
      %595 = vmatprep.mubr.f32.mxu0 0.0
      %596 = vmatmul.mubr.f32.gmra.mxu0 %v524
      %v597 = vpop.f32.mrf.mxu0
      %v598 = vadd.f32 0.0, %v597
      %v599 = vpop.f32.mrf.mxu0
      %600 = vdwg.mxu0
      %603 = vrot.lane.b32.xlu0 %v593, 64
      %v604 = vpop.permute.xlu0 %603
      %605 = vrot.lane.b32.xlu0 %v598, 64
      %v606 = vpop.permute.xlu0 %605
      %v609 = vadd.f32 %v494, %v604
      %v610 = vadd.f32 %v495, %v606
      %v611 = vld [vmem:[#allocation3 + $0x1] sm:$0xff]
      %v612 = vld [vmem:[#allocation3 + $0x9] sm:$0xff]
      %s613 = scalar_lea.vmem %s3, 64
      %v614 = vld [vmem:[%s613] sm:$0xff]
      %v615 = vld [vmem:[%s613 + $0x8] sm:$0xff]
      %v616 = vld [vmem:[%s613 + $0x10] sm:$0xff]
      %v617 = vld [vmem:[%s613 + $0x18] sm:$0xff]
      %v618 = vld [vmem:[%s613 + $0x20] sm:$0xff]
      %v619 = vld [vmem:[%s613 + $0x28] sm:$0xff]
      %v620 = vld [vmem:[%s613 + $0x30] sm:$0xff]
      %v621 = vld [vmem:[%s613 + $0x38] sm:$0xff]
      %v623 = vsel %vm205, %v611, 0
      %v626 = vsel %vm205, %v612, 0
      %628 = vmatprep.subr.mxu0 0.0
      %629 = vmatpush1.msra.mxu0 0.0
      %630 = vmatprep.subr.mxu0 0.0
      %631 = vmatpush1.msra.mxu0 0.0
      %632 = vmatprep.subr.mxu0 0.0
      %633 = vmatpush1.msra.mxu0 0.0
      %634 = vmatprep.subr.mxu0 0.0
      %635 = vmatpush1.msra.mxu0 0.0
      %636 = vmatprep.subr.mxu0 0.0
      %637 = vmatpush1.msra.mxu0 0.0
      %638 = vmatprep.subr.mxu0 0.0
      %639 = vmatpush1.msra.mxu0 0.0
      %640 = vmatprep.subr.mxu0 0.0
      %641 = vmatpush1.msra.mxu0 0.0
      %642 = vmatprep.subr.mxu0 0.0
      %643 = vmatpush1.msra.mxu0 0.0
      %644 = vmatprep.subr.mxu0 0.0
      %645 = vmatpush1.msra.mxu0 %v621
      %646 = vmatprep.subr.mxu0 0.0
      %647 = vmatpush1.msra.mxu0 %v620
      %648 = vmatprep.subr.mxu0 0.0
      %649 = vmatpush1.msra.mxu0 %v619
      %650 = vmatprep.subr.mxu0 0.0
      %651 = vmatpush1.msra.mxu0 %v618
      %652 = vmatprep.subr.mxu0 0.0
      %653 = vmatpush1.msra.mxu0 %v617
      %654 = vmatprep.subr.mxu0 0.0
      %655 = vmatpush1.msra.mxu0 %v616
      %656 = vmatprep.subr.mxu0 0.0
      %657 = vmatpush1.msra.mxu0 %v615
      %658 = vmatprep.subr.mxu0 0.0
      %659 = vmatpush1.msra.mxu0 %v614
      %660 = vmatprep.subr.mxu0 0.0
      %661 = vmatpush2.msra.mxu0 0.0
      %662 = vmatprep.subr.mxu0 0.0
      %663 = vmatpush2.msra.mxu0 0.0
      %664 = vmatprep.subr.mxu0 0.0
      %665 = vmatpush2.msra.mxu0 0.0
      %666 = vmatprep.subr.mxu0 0.0
      %667 = vmatpush2.msra.mxu0 0.0
      %668 = vmatprep.subr.mxu0 0.0
      %669 = vmatpush2.msra.mxu0 0.0
      %670 = vmatprep.subr.mxu0 0.0
      %671 = vmatpush2.msra.mxu0 0.0
      %672 = vmatprep.subr.mxu0 0.0
      %673 = vmatpush2.msra.mxu0 0.0
      %674 = vmatprep.subr.mxu0 0.0
      %675 = vmatpush2.msra.mxu0 0.0
      %676 = vmatprep.subr.mxu0 0.0
      %677 = vmatpush2.msra.mxu0 0.0
      %678 = vmatprep.subr.mxu0 0.0
      %679 = vmatpush2.msra.mxu0 0.0
      %680 = vmatprep.subr.mxu0 0.0
      %681 = vmatpush2.msra.mxu0 0.0
      %682 = vmatprep.subr.mxu0 0.0
      %683 = vmatpush2.msra.mxu0 0.0
      %684 = vmatprep.subr.mxu0 0.0
      %685 = vmatpush2.msra.mxu0 0.0
      %686 = vmatprep.subr.mxu0 0.0
      %687 = vmatpush2.msra.mxu0 0.0
      %688 = vmatprep.subr.mxu0 0.0
      %689 = vmatpush2.msra.mxu0 0.0
      %690 = vmatprep.subr.mxu0 0.0
      %691 = vmatpush2.msra.mxu0 0.0
      %692 = vmatprep.mubr.f32.mxu0 0.0
      %693 = vmatmul.mubr.f32.gmra.mxu0 %v623
      %v694 = vpop.f32.mrf.mxu0
      %v695 = vadd.f32 0.0, %v694
      %v696 = vpop.f32.mrf.mxu0
      %697 = vmatprep.mubr.f32.mxu0 0.0
      %698 = vmatmul.mubr.f32.gmra.mxu0 %v626
      %v699 = vpop.f32.mrf.mxu0
      %v700 = vadd.f32 0.0, %v699
      %v701 = vpop.f32.mrf.mxu0
      %702 = vdwg.mxu0
      %705 = vrot.lane.b32.xlu0 %v695, 64
      %v706 = vpop.permute.xlu0 %705
      %707 = vrot.lane.b32.xlu0 %v700, 64
      %v708 = vpop.permute.xlu0 %707
      %v711 = vadd.f32 %v609, %v706
      %v712 = vadd.f32 %v610, %v708
      %v713 = vld [vmem:[#allocation3 + $0x2] sm:$0xff]
      %v714 = vld [vmem:[#allocation3 + $0xa] sm:$0xff]
      %s715 = scalar_lea.vmem %s3, 128
      %v716 = vld [vmem:[%s715] sm:$0xff]
      %v717 = vld [vmem:[%s715 + $0x8] sm:$0xff]
      %v718 = vld [vmem:[%s715 + $0x10] sm:$0xff]
      %v719 = vld [vmem:[%s715 + $0x18] sm:$0xff]
      %v720 = vld [vmem:[%s715 + $0x20] sm:$0xff]
      %v721 = vld [vmem:[%s715 + $0x28] sm:$0xff]
      %v722 = vld [vmem:[%s715 + $0x30] sm:$0xff]
      %v723 = vld [vmem:[%s715 + $0x38] sm:$0xff]
      %v725 = vsel %vm205, %v713, 0
      %v728 = vsel %vm205, %v714, 0
      %730 = vmatprep.subr.mxu0 0.0
      %731 = vmatpush1.msra.mxu0 0.0
      %732 = vmatprep.subr.mxu0 0.0
      %733 = vmatpush1.msra.mxu0 0.0
      %734 = vmatprep.subr.mxu0 0.0
      %735 = vmatpush1.msra.mxu0 0.0
      %736 = vmatprep.subr.mxu0 0.0
      %737 = vmatpush1.msra.mxu0 0.0
      %738 = vmatprep.subr.mxu0 0.0
      %739 = vmatpush1.msra.mxu0 0.0
      %740 = vmatprep.subr.mxu0 0.0
      %741 = vmatpush1.msra.mxu0 0.0
      %742 = vmatprep.subr.mxu0 0.0
      %743 = vmatpush1.msra.mxu0 0.0
      %744 = vmatprep.subr.mxu0 0.0
      %745 = vmatpush1.msra.mxu0 0.0
      %746 = vmatprep.subr.mxu0 0.0
      %747 = vmatpush1.msra.mxu0 %v723
      %748 = vmatprep.subr.mxu0 0.0
      %749 = vmatpush1.msra.mxu0 %v722
      %750 = vmatprep.subr.mxu0 0.0
      %751 = vmatpush1.msra.mxu0 %v721
      %752 = vmatprep.subr.mxu0 0.0
      %753 = vmatpush1.msra.mxu0 %v720
      %754 = vmatprep.subr.mxu0 0.0
      %755 = vmatpush1.msra.mxu0 %v719
      %756 = vmatprep.subr.mxu0 0.0
      %757 = vmatpush1.msra.mxu0 %v718
      %758 = vmatprep.subr.mxu0 0.0
      %759 = vmatpush1.msra.mxu0 %v717
      %760 = vmatprep.subr.mxu0 0.0
      %761 = vmatpush1.msra.mxu0 %v716
      %762 = vmatprep.subr.mxu0 0.0
      %763 = vmatpush2.msra.mxu0 0.0
      %764 = vmatprep.subr.mxu0 0.0
      %765 = vmatpush2.msra.mxu0 0.0
      %766 = vmatprep.subr.mxu0 0.0
      %767 = vmatpush2.msra.mxu0 0.0
      %768 = vmatprep.subr.mxu0 0.0
      %769 = vmatpush2.msra.mxu0 0.0
      %770 = vmatprep.subr.mxu0 0.0
      %771 = vmatpush2.msra.mxu0 0.0
      %772 = vmatprep.subr.mxu0 0.0
      %773 = vmatpush2.msra.mxu0 0.0
      %774 = vmatprep.subr.mxu0 0.0
      %775 = vmatpush2.msra.mxu0 0.0
      %776 = vmatprep.subr.mxu0 0.0
      %777 = vmatpush2.msra.mxu0 0.0
      %778 = vmatprep.subr.mxu0 0.0
      %779 = vmatpush2.msra.mxu0 0.0
      %780 = vmatprep.subr.mxu0 0.0
      %781 = vmatpush2.msra.mxu0 0.0
      %782 = vmatprep.subr.mxu0 0.0
      %783 = vmatpush2.msra.mxu0 0.0
      %784 = vmatprep.subr.mxu0 0.0
      %785 = vmatpush2.msra.mxu0 0.0
      %786 = vmatprep.subr.mxu0 0.0
      %787 = vmatpush2.msra.mxu0 0.0
      %788 = vmatprep.subr.mxu0 0.0
      %789 = vmatpush2.msra.mxu0 0.0
      %790 = vmatprep.subr.mxu0 0.0
      %791 = vmatpush2.msra.mxu0 0.0
      %792 = vmatprep.subr.mxu0 0.0
      %793 = vmatpush2.msra.mxu0 0.0
      %794 = vmatprep.mubr.f32.mxu0 0.0
      %795 = vmatmul.mubr.f32.gmra.mxu0 %v725
      %v796 = vpop.f32.mrf.mxu0
      %v797 = vadd.f32 0.0, %v796
      %v798 = vpop.f32.mrf.mxu0
      %799 = vmatprep.mubr.f32.mxu0 0.0
      %800 = vmatmul.mubr.f32.gmra.mxu0 %v728
      %v801 = vpop.f32.mrf.mxu0
      %v802 = vadd.f32 0.0, %v801
      %v803 = vpop.f32.mrf.mxu0
      %804 = vdwg.mxu0
      %807 = vrot.lane.b32.xlu0 %v797, 64
      %v808 = vpop.permute.xlu0 %807
      %809 = vrot.lane.b32.xlu0 %v802, 64
      %v810 = vpop.permute.xlu0 %809
      %v813 = vadd.f32 %v711, %v808
      %v814 = vadd.f32 %v712, %v810
      %vm815 = vcmp.gt.f32.partialorder %v813, 0.0
      %vm816 = vcmp.gt.f32.partialorder %v814, 0.0
      %v817 = vmin.f32 %v813, 0.0
      %v818 = vmin.f32 %v814, 0.0
      %v819 = vmul.f32 %v817, 1.442695
      %v820 = vpow.pop %v819
      %v821 = vmul.f32 %v818, 1.442695
      %v822 = vpow.pop %v821
      %v823 = vsub.f32 %v820, 1.0
      %v824 = vsub.f32 %v822, 1.0
      %v825 = vsel %vm815, %v813, %v823
      %v826 = vsel %vm816, %v814, %v824
      %v827 = vsel %vm205, %v506, %v825
      %v828 = vsel %vm205, %v507, %v826
      %829 = vst [vmem:[%s197] sm:$0xff] %v827
      %830 = vst [vmem:[%s197 + $0x8] sm:$0xff] %v828
      %p831 = scmp.lt.s32.totalorder %s15, 1
      %s832 = scalar_select %p831, %s15, 1
      %s833 = smul.addr %s832, 2
      %s834 = smul.addr %s833, 8
      %s835 = scalar_lea.vmem %s4, %s834
      // Predicated region
      $region37: #{xcoder_forward_impl.1} parent=35 // pred_check
        %p836 = pneg %p122
      $region38: #{xcoder_forward_impl.1} parent=35 // pred_check_branch
        %838 = sbr.rel (%p836) target = $region40
      $region39: #{xcoder_forward_impl.1} parent=35 // pred_region
        _
      $region40: #{xcoder_forward_impl.1} parent=35 // pred_fallthru
        _
    $region36: #{xcoder_forward_impl.1} parent=5 // pred_fallthru
      _
    %p839 = scmp.le.s32.totalorder 2, %s10
    // Predicated region
    $region41: #{xcoder_forward_impl.1} parent=5 // pred_check
      %p840 = pneg %p839
    $region42: #{xcoder_forward_impl.1} parent=5 // pred_check_branch
      %842 = sbr.rel (%p840) target = $region44
    $region43: #{xcoder_forward_impl.1} parent=5 // pred_region
      %s843 = ssub.s32 %s10, 2
      // Predicated region
      $region45: #{xcoder_forward_impl.1} parent=43 // pred_check
        %p844 = pneg %p128
      $region46: #{xcoder_forward_impl.1} parent=43 // pred_check_branch
        %846 = sbr.rel (%p844) target = $region48
      $region47: #{xcoder_forward_impl.1} parent=43 // pred_region
        %p847 = scmp.lt.s32.totalorder %s16, 1
        %s848 = scalar_select %p847, %s16, 1
        %s849 = smul.addr %s848, 2
        %s850 = smul.addr %s849, 8
        %s851 = scalar_lea.vmem %s4, %s850
      $region48: #{xcoder_forward_impl.1} parent=43 // pred_fallthru
        _
    $region44: #{xcoder_forward_impl.1} parent=5 // pred_fallthru
      _
  $region6: #{xcoder_forward_impl.1} parent=0 // loop_footer
    %s14 = sadd.s32 1, %s10
  $region7: #{xcoder_forward_impl.1} parent=0 // loop_footer_branch
    %9 = sbr.rel target = $region3
  $region8: #{xcoder_forward_impl.1} parent=0 // loop_exit
    _

</llo_original>
